<compile_context>
chip_gen: v7x
topology: tpu7x:2x2x1
jax: 0.10.0
libtpu: 0.0.40
codegen_flags: <defaults>
</compile_context>

<pallas_src>
import jax
import jax.numpy as jnp
from jax.experimental import pallas as pl
from jax.experimental.pallas import tpu as pltpu
import numpy as np


_LANES = 128


def _affine_stream_kernel(x_ref, scale_ref, shift_ref, y_ref):
    """Streaming elementwise FMA: y = x * scale + shift.

    x_ref:     (TB, L) VMEM tile of flattened inputs
    scale_ref: (1,  L) VMEM, grid-invariant (stays resident)
    shift_ref: (1,  L) VMEM, grid-invariant (stays resident)
    y_ref:     (TB, L) VMEM output tile
    """
    y_ref[...] = x_ref[...] * scale_ref[...] + shift_ref[...]


def _fold_affine_cascade(log_scales, shifts):
    """Collapse K elementwise affine transforms into a single (scale, shift).

    Cascade: y = (((x*s1+b1)*s2+b2)...) = x * prod_k s_k + fold_k(shifts).
    Also returns the (data-independent) total logabsdet scalar.
    """
    K, D = log_scales.shape
    scales = jnp.exp(log_scales.astype(jnp.float32))             # (K, D)
    scale_total = jnp.ones((D,), jnp.float32)
    shift_total = jnp.zeros((D,), jnp.float32)
    for k in range(K):                                           # K small & static
        scale_total = scale_total * scales[k]
        shift_total = shift_total * scales[k] + shifts[k].astype(jnp.float32)
    lad_scalar = jnp.sum(log_scales.astype(jnp.float32))         # sum_k sum_d ls
    return scale_total, shift_total, lad_scalar


def _legalize_tile_rows(num_rows, tile_rows):
    """Pick a legal row-tile: full extent, or a multiple of 8 sublanes."""
    if tile_rows is None:
        tile_rows = 1024          # 1024 x 128 f32 = 512 KiB per buffer
    if tile_rows >= num_rows:
        return num_rows           # full first dim is always a legal block shape
    return max(8, (tile_rows // 8) * 8)


def _run_affine_kernel(x2, scale2, shift2, tile_rows):
    """Tile x2 (R, L) over rows and apply the fused affine on each tile."""
    R, L = x2.shape
    grid = (pl.cdiv(R, tile_rows),)
    return pl.pallas_call(
        _affine_stream_kernel,
        grid=grid,
        in_specs=[
            pl.BlockSpec((tile_rows, L), lambda i: (i, 0)),
            pl.BlockSpec((1, L), lambda i: (0, 0)),   # params stay VMEM-resident
            pl.BlockSpec((1, L), lambda i: (0, 0)),
        ],
        out_specs=pl.BlockSpec((tile_rows, L), lambda i: (i, 0)),
        out_shape=jax.ShapeDtypeStruct((R, L), x2.dtype),
        compiler_params=pltpu.CompilerParams(
            dimension_semantics=("parallel",),        # shard rows across TCs (v7x)
        ),
    )(x2, scale2, shift2)


def composite_transform_forward(x, log_scales, shifts, *, tile_rows=None):
    """CompositeTransform.forward with K stacked elementwise-affine children."""
    B, D = x.shape

    scale_total, shift_total, lad_scalar = _fold_affine_cascade(log_scales, shifts)
    # Compute in the input dtype (bf16 stays bf16 on v6e/v7x; f32 everywhere else).
    scale_total = scale_total.astype(x.dtype)
    shift_total = shift_total.astype(x.dtype)

    if D <= _LANES and _LANES % D == 0 and (B * D) % _LANES == 0:
        # Lane-dense path: flatten (B, D) -> (B*D/128, 128); each 128-lane row
        # holds 128/D consecutive samples, so the params are tiled along lanes.
        rep = _LANES // D
        R = (B * D) // _LANES
        x2 = x.reshape(R, _LANES)
        scale2 = jnp.tile(scale_total, rep).reshape(1, _LANES)
        shift2 = jnp.tile(shift_total, rep).reshape(1, _LANES)
        tb = _legalize_tile_rows(R, tile_rows)
        y2 = _run_affine_kernel(x2, scale2, shift2, tb)
        y = y2.reshape(B, D)
    else:
        # Generic fallback: keep features on lanes, tile over the batch.
        scale2 = scale_total.reshape(1, D)
        shift2 = shift_total.reshape(1, D)
        tb = _legalize_tile_rows(B, tile_rows)
        y = _run_affine_kernel(x, scale2, shift2, tb)

    # total_logabsdet is data independent: broadcast the scalar to the batch.
    lad = jnp.full((B,), lad_scalar, dtype=jnp.float32)
    # TODO(synk): pass input_output_aliases={0: 0} when the caller donates x to
    # reuse the input HBM buffer for the output (minor, optional win).
    return y, lad


def composite_transform_reference(x, log_scales, shifts):
    """Pure-JAX reference of CompositeTransform._cascade with affine children."""
    B = x.shape[0]
    outputs = x.astype(jnp.float32)
    total_logabsdet = jnp.zeros((B,), dtype=jnp.float32)
    for k in range(log_scales.shape[0]):
        outputs = outputs * jnp.exp(log_scales[k]) + shifts[k]
        total_logabsdet = total_logabsdet + jnp.sum(log_scales[k])
    return outputs.astype(x.dtype), total_logabsdet


def _check(B, D, K, key, tile_rows=None):
    k_x, k_ls, k_sh = jax.random.split(key, 3)
    x = jax.random.normal(k_x, (B, D), dtype=jnp.float32)
    log_scales = 0.1 * jax.random.normal(k_ls, (K, D), dtype=jnp.float32)
    shifts = 0.05 * jax.random.normal(k_sh, (K, D), dtype=jnp.float32)

    y, lad = composite_transform_forward(x, log_scales, shifts, tile_rows=tile_rows)
    y = jax.block_until_ready(y)
    lad = jax.block_until_ready(lad)

    y_ref, lad_ref = composite_transform_reference(x, log_scales, shifts)
    np.testing.assert_allclose(np.asarray(y), np.asarray(y_ref), rtol=1e-5, atol=1e-5)
    np.testing.assert_allclose(np.asarray(lad), np.asarray(lad_ref), rtol=1e-5, atol=1e-5)


if __name__ == "__main__":
    key = jax.random.PRNGKey(0)
    k0, k1, k2 = jax.random.split(key, 3)

    # Primary case: batch=8, features=32, 3 composed affine transforms
    # (lane-dense path: (8, 32) -> (2, 128)).
    _check(B=8, D=32, K=3, key=k0)

    # Multi-tile lane-dense path with a remainder block (exercises the row grid,
    # double buffering and write masking): (72, 32) -> (18, 128), 8-row tiles.
    _check(B=72, D=32, K=4, key=k1, tile_rows=8)

    # Generic fallback path (D does not divide 128): batch-tiled (B, D) layout.
    _check(B=24, D=48, K=3, key=k2, tile_rows=8)

    print("KERNEL_OK")
</pallas_src>

<mosaic_0001>
module attributes {stable_mosaic.version = 11 : i64} {
  func.func @_affine_stream_kernel(%arg0: i32, %arg1: memref<2x128xf32, #tpu.memory_space<vmem>>, %arg2: memref<1x128xf32, #tpu.memory_space<vmem>>, %arg3: memref<1x128xf32, #tpu.memory_space<vmem>>, %arg4: memref<2x128xf32, #tpu.memory_space<vmem>>) attributes {dimension_semantics = [#tpu.dimension_semantics<parallel>], iteration_bounds = array<i64: 1>, scalar_prefetch = 0 : i64, scratch_operands = 0 : i64, tpu.core_type = #tpu.core_type<tc>, window_params = [{transform_indices = @transform_0, window_bounds = array<i64: 2, 128>}, {pipeline_mode = #tpu.pipeline_mode<synchronous>, transform_indices = @transform_1, window_bounds = array<i64: 1, 128>}, {pipeline_mode = #tpu.pipeline_mode<synchronous>, transform_indices = @transform_2, window_bounds = array<i64: 1, 128>}, {transform_indices = @transform_3, window_bounds = array<i64: 2, 128>}]} {
    %c0 = arith.constant 0 : index
    %c0_0 = arith.constant 0 : index
    %0 = vector.load %arg1[%c0, %c0_0] : memref<2x128xf32, #tpu.memory_space<vmem>>, vector<2x128xf32>
    %c0_1 = arith.constant 0 : index
    %c0_2 = arith.constant 0 : index
    %1 = vector.load %arg2[%c0_1, %c0_2] : memref<1x128xf32, #tpu.memory_space<vmem>>, vector<1x128xf32>
    %2 = vector.broadcast %1 : vector<1x128xf32> to vector<2x128xf32>
    %3 = arith.mulf %0, %2 : vector<2x128xf32>
    %c0_3 = arith.constant 0 : index
    %c0_4 = arith.constant 0 : index
    %4 = vector.load %arg3[%c0_3, %c0_4] : memref<1x128xf32, #tpu.memory_space<vmem>>, vector<1x128xf32>
    %5 = vector.broadcast %4 : vector<1x128xf32> to vector<2x128xf32>
    %6 = arith.addf %3, %5 : vector<2x128xf32>
    %c0_5 = arith.constant 0 : index
    %c0_6 = arith.constant 0 : index
    %7 = vector.load %arg4[%c0_5, %c0_6] : memref<2x128xf32, #tpu.memory_space<vmem>>, vector<2x128xf32>
    tpu.vector_store %arg4[%c0_5, %c0_6], %6 {strides = array<i32>} : memref<2x128xf32, #tpu.memory_space<vmem>>, vector<2x128xf32>,
    return
  }
  func.func @transform_0(%arg0: i32) -> (i32, i32) {
    %c0_i32 = arith.constant 0 : i32
    %c0_i32_0 = arith.constant 0 : i32
    return %arg0, %c0_i32 : i32, i32
  }
  func.func @transform_1(%arg0: i32) -> (i32, i32) {
    %c0_i32 = arith.constant 0 : i32
    %c0_i32_0 = arith.constant 0 : i32
    %c0_i32_1 = arith.constant 0 : i32
    return %c0_i32, %c0_i32_0 : i32, i32
  }
  func.func @transform_2(%arg0: i32) -> (i32, i32) {
    %c0_i32 = arith.constant 0 : i32
    %c0_i32_0 = arith.constant 0 : i32
    %c0_i32_1 = arith.constant 0 : i32
    return %c0_i32, %c0_i32_0 : i32, i32
  }
  func.func @transform_3(%arg0: i32) -> (i32, i32) {
    %c0_i32 = arith.constant 0 : i32
    %c0_i32_0 = arith.constant 0 : i32
    return %arg0, %c0_i32 : i32, i32
  }
}

</mosaic_0001>

<llo_original>
// kernel: tpu_custom_call.1
$region0: #{tpu_custom_call.1}
  #allocation0 [shape = 'u32[]', space=smem, size = 0x4, offset = 0x4, fixed_abs, tag = 'smem constant byte address 0x4 - core index']
  #allocation1 [shape = 'u32[144,128]{1,0:T(1,128)}', space=vmem, size = 0x12000, scoped, tag = 'internal scratch']
  %s0 = inlined_call_operand.hbm [shape: f32[2,128], index: 0, kind: input, shape index: {}]
  %s1 = inlined_call_operand.vmem [shape: f32[1,128], index: 1, kind: input, shape index: {}]
  %s2 = inlined_call_operand.vmem [shape: f32[1,128], index: 2, kind: input, shape index: {}]
  %s3 = inlined_call_operand.hbm [shape: f32[2,128], index: 3, kind: output, shape index: {}]
  %s4 = sld [smem:[#allocation0]]
  $region26: #{tpu_custom_call.1} parent=0
    _
  %s6 = ssub.s32 1, %s4
  %s7 = scalar_select 0, %s6, %s4
  $region1: #{tpu_custom_call.1} parent=0
    #allocation2 [shape = 'u8[1024]{0}', space=vmem, size = 0x400, scoped, tag = 'input window, operand 0, single buffered']
    #allocation3 [shape = 's32[1]{0}', space=sflag, size = 0x4, scoped, tag = 'scoped memory for tpu_custom_call.1']
    #allocation4 [shape = 's32[1]{0}', space=sflag, size = 0x4, scoped, tag = 'scoped memory for tpu_custom_call.1']
    #allocation5 [shape = 'u8[1024]{0}', space=vmem, size = 0x400, scoped, tag = 'output window, operand 0, single buffered']
    %8 = vsyncpa [#allocation3], 0
    %9 = vsyncpa [#allocation4], 0
    // Predicated region
    $region2: #{tpu_custom_call.1} parent=1 // pred_check
      _
    $region3: #{tpu_custom_call.1} parent=1 // pred_check_branch
      %11 = sbr.rel (0) target = $region5
    $region4: #{tpu_custom_call.1} parent=1 // pred_region
      %s13 = ssub.s32 32, 32
      %14 = vsyncadd [#allocation3], %s13
      %s16 = sshll.u32 [#allocation2], 4
      %s17 = int_to_ptr.vmem [resolvable:$true] %s16
      %19 = dma.hbm_to_vmem [thread:$0]  %s0, 32, %s17, [#allocation3]
    $region5: #{tpu_custom_call.1} parent=1 // pred_fallthru
      _
    // Predicated region
    $region6: #{tpu_custom_call.1} parent=1 // pred_check
      _
    $region7: #{tpu_custom_call.1} parent=1 // pred_check_branch
      %21 = sbr.rel (0) target = $region9
    $region8: #{tpu_custom_call.1} parent=1 // pred_region
      _
    $region9: #{tpu_custom_call.1} parent=1 // pred_fallthru
      _
    // Predicated region
    $region10: #{tpu_custom_call.1} parent=1 // pred_check
      _
    $region11: #{tpu_custom_call.1} parent=1 // pred_check_branch
      %23 = sbr.rel (0) target = $region13
    $region12: #{tpu_custom_call.1} parent=1 // pred_region
      _
    $region13: #{tpu_custom_call.1} parent=1 // pred_fallthru
      _
    // Predicated region
    $region14: #{tpu_custom_call.1} parent=1 // pred_check
      _
    $region15: #{tpu_custom_call.1} parent=1 // pred_check_branch
      %25 = sbr.rel (0) target = $region17
    $region16: #{tpu_custom_call.1} parent=1 // pred_region
      %26 = dma.done [#allocation3], 32
    $region17: #{tpu_custom_call.1} parent=1 // pred_fallthru
      _
    %v27 = vld [vmem:[#allocation2] sm:$0x3]
    %v28 = vld [vmem:[%s1] sm:$0x1]
    %v30 = vlaneseq
    %v31 = vshrl.u32 %v30, 7
    %v32 = vsub.s32 0, %v31
    %v33 = vrot.slane %v28, %v32
    %v35 = vmul.f32 %v27, %v33
    %v36 = vld [vmem:[%s2] sm:$0x1]
    %v38 = vlaneseq
    %v39 = vshrl.u32 %v38, 7
    %v40 = vsub.s32 0, %v39
    %v41 = vrot.slane %v36, %v40
    %v43 = vadd.f32 %v35, %v41
    %44 = vst [vmem:[#allocation5] sm:$0x3] %v43
    // Predicated region
    $region18: #{tpu_custom_call.1} parent=1 // pred_check
      _
    $region19: #{tpu_custom_call.1} parent=1 // pred_check_branch
      %46 = sbr.rel (0) target = $region21
    $region20: #{tpu_custom_call.1} parent=1 // pred_region
      %s48 = ssub.s32 32, 32
      %49 = vsyncadd [#allocation4], %s48
      %s51 = sshll.u32 [#allocation5], 4
      %s52 = int_to_ptr.vmem [resolvable:$true] %s51
      %54 = dma.vmem_to_hbm [thread:$0]  %s52, 32, %s3, [#allocation4]
    $region21: #{tpu_custom_call.1} parent=1 // pred_fallthru
      _
    // Predicated region
    $region22: #{tpu_custom_call.1} parent=1 // pred_check
      _
    $region23: #{tpu_custom_call.1} parent=1 // pred_check_branch
      %56 = sbr.rel (0) target = $region25
    $region24: #{tpu_custom_call.1} parent=1 // pred_region
      %57 = dma.done [#allocation4], 32
    $region25: #{tpu_custom_call.1} parent=1 // pred_fallthru
      _
    %58 = vsyncpa [#allocation3], 1
    %59 = vsyncpa [#allocation4], 1

</llo_original>
